<compile_context>
chip_gen: v5e
topology: v5e:2x2
jax: 0.10.0
libtpu: 0.0.40
codegen_flags: <defaults>
</compile_context>

<pallas_src>
import jax
import jax.numpy as jnp
from jax.experimental import pallas as pl
from jax.experimental.pallas import tpu as pltpu


def _round_up(x, m):
    return ((x + m - 1) // m) * m


def _lr_kernel(x_ref, w_ref, b_ref, o_ref):
    # x_ref: (TM, Cin)  activation row-tile (bf16/f32)
    # w_ref: (Cin, TN)  folded low-rank weight tile (bf16/f32)
    # b_ref: (1,  TN)   folded bias tile (f32)
    # o_ref: (TM, TN)
    acc = jnp.dot(x_ref[...], w_ref[...], preferred_element_type=jnp.float32)
    o_ref[...] = (acc + b_ref[...]).astype(o_ref.dtype)


def lrlayer_pallas(x, wq, bq, wp, bp, *, compute_dtype=jnp.bfloat16,
                   out_dtype=None, block_m=512, block_n=512):
    """LRLayer forward: y = (x @ Wq.T + bq) @ Wp.T + bp over the last dim.

    PyTorch nn.Linear layouts: x: (..., Cin), wq: (rank, Cin), bq: (rank,),
    wp: (Cout, rank), bp: (Cout,).  Returns (..., Cout) in out_dtype
    (defaults to x.dtype).
    """
    *lead, cin = x.shape
    cout = wp.shape[0]
    out_dtype = x.dtype if out_dtype is None else out_dtype

    m = 1
    for d in lead:
        m *= d
    if m == 0:                                   # empty-batch early return
        return jnp.zeros((*lead, cout), out_dtype)

    # ---- Fold the low-rank pair into one dense weight + bias (f32 fold). ----
    # Under jit with static weights this fold is hoisted across calls.
    # TODO(synk): gate the fold on v5e when cin*cout/(rank*(cin+cout)) is large
    # enough to make the folded GEMM MXU-bound; keep the two-stage form there.
    w = wq.T.astype(jnp.float32) @ wp.T.astype(jnp.float32)            # (Cin, Cout)
    b = bq.astype(jnp.float32) @ wp.T.astype(jnp.float32) + bp.astype(jnp.float32)

    x2 = x.reshape(m, cin).astype(compute_dtype)
    w = w.astype(compute_dtype)
    b2 = b.reshape(1, cout)                       # bias stays f32 for the epilogue

    in_bytes = jnp.dtype(compute_dtype).itemsize
    out_bytes = jnp.dtype(out_dtype).itemsize

    # ---- Cout tiling: keep the whole folded weight VMEM-resident if cheap. --
    if cout <= block_n or 2 * cin * cout * in_bytes <= (8 << 20):
        tn = cout                                 # weight block index is constant
    else:
        tn = block_n                              # multiple of 128
        while tn > 128 and 2 * cin * tn * in_bytes > (16 << 20):
            tn //= 2
    # TODO(synk): add a K ("arbitrary") grid axis with an f32 VMEM accumulator
    # when cin is so large that a single (cin, tn) weight tile blows the budget.

    # ---- Row tiling from an explicit activation VMEM budget. ----------------
    act_budget = 12 << 20                         # x + out tiles, double buffered
    tm = act_budget // (2 * (cin * in_bytes + tn * out_bytes))
    tm = max(8, min(block_m, (tm // 8) * 8))
    # Split rows into >= 2 blocks when possible so v7x's 2 TCs both get work.
    tm = min(tm, max(8, _round_up(pl.cdiv(m, 2), 8)))

    gm = pl.cdiv(m, tm)
    gn = pl.cdiv(cout, tn)

    # Keep the axis with >1 block leading so the leading "parallel" axis is the
    # one that actually shards across TensorCores (only matters when gm == 1,
    # where the x block index is constant either way).
    if gm == 1 and gn > 1:
        grid = (gn, gm)
        x_map = lambda j, i: (i, 0)
        w_map = lambda j, i: (0, j)
        o_map = lambda j, i: (i, j)
    else:
        grid = (gm, gn)
        x_map = lambda i, j: (i, 0)
        w_map = lambda i, j: (0, j)
        o_map = lambda i, j: (i, j)

    vmem_need = 2 * (tm * cin * in_bytes + tm * tn * out_bytes
                     + cin * tn * in_bytes + tn * 4)
    vmem_limit = int(min(max(vmem_need + (2 << 20), 16 << 20), 64 << 20))

    cost = pl.CostEstimate(
        flops=2 * m * cin * cout,
        transcendentals=0,
        bytes_accessed=(m * cin * in_bytes + cin * cout * in_bytes
                        + m * cout * out_bytes + cout * 4),
    )

    out = pl.pallas_call(
        _lr_kernel,
        out_shape=jax.ShapeDtypeStruct((m, cout), out_dtype),
        grid_spec=pltpu.PrefetchScalarGridSpec(
            num_scalar_prefetch=0,
            grid=grid,
            in_specs=[
                pl.BlockSpec((tm, cin), x_map),   # activation row tile
                pl.BlockSpec((cin, tn), w_map),   # folded weight (resident if gn==1)
                pl.BlockSpec((1, tn), w_map),     # folded bias (f32)
            ],
            out_specs=pl.BlockSpec((tm, tn), o_map),
        ),
        compiler_params=pltpu.CompilerParams(
            dimension_semantics=("parallel", "parallel"),
            vmem_limit_bytes=vmem_limit),
        cost_estimate=cost,
    )(x2, w, b2)

    return out.reshape(*lead, cout)


def lrlayer_reference(x, wq, bq, wp, bp):
    """Pure-JAX reference mirroring the PyTorch forward exactly (sequential)."""
    q = x @ wq.T + bq
    return q @ wp.T + bp


if __name__ == "__main__":
    B, L, Cin, Cout, rank = 2, 16, 16, 32, 4

    key = jax.random.PRNGKey(0)
    ks = jax.random.split(key, 5)
    x = jax.random.normal(ks[0], (B, L, Cin), jnp.float32)
    wq = jax.random.normal(ks[1], (rank, Cin), jnp.float32) * 0.1   # nn.Linear(inp, rank).weight
    bq = jax.random.normal(ks[2], (rank,), jnp.float32) * 0.1
    wp = jax.random.normal(ks[3], (Cout, rank), jnp.float32) * 0.1  # nn.Linear(rank, oup).weight
    bp = jax.random.normal(ks[4], (Cout,), jnp.float32) * 0.1

    out = lrlayer_pallas(x, wq, bq, wp, bp)
    out = jax.block_until_ready(out)

    ref = lrlayer_reference(x, wq, bq, wp, bp)
    assert out.shape == (B, L, Cout)
    assert out.dtype == x.dtype
    # bf16 operands on the MXU (f32 accumulate) => relaxed tolerance vs f32 ref.
    assert jnp.allclose(out, ref, atol=1e-2, rtol=1e-2), "mismatch vs reference"

    print("KERNEL_OK")
</pallas_src>

<mosaic_0001>
module attributes {stable_mosaic.version = 11 : i64} {
  func.func @_lr_kernel(%arg0: i32, %arg1: i32, %arg2: memref<16x16xbf16, #tpu.memory_space<vmem>>, %arg3: memref<16x32xbf16, #tpu.memory_space<vmem>>, %arg4: memref<1x32xf32, #tpu.memory_space<vmem>>, %arg5: memref<16x32xf32, #tpu.memory_space<vmem>>) attributes {dimension_semantics = [#tpu.dimension_semantics<parallel>, #tpu.dimension_semantics<parallel>], iteration_bounds = array<i64: 2, 1>, scalar_prefetch = 0 : i64, scratch_operands = 0 : i64, tpu.core_type = #tpu.core_type<tc>, window_params = [{transform_indices = @transform_0, window_bounds = array<i64: 16, 16>}, {transform_indices = @transform_1, window_bounds = array<i64: 16, 32>}, {transform_indices = @transform_2, window_bounds = array<i64: 1, 32>}, {transform_indices = @transform_3, window_bounds = array<i64: 16, 32>}]} {
    %c0 = arith.constant 0 : index
    %c0_0 = arith.constant 0 : index
    %0 = vector.load %arg2[%c0, %c0_0] : memref<16x16xbf16, #tpu.memory_space<vmem>>, vector<16x16xbf16>
    %c0_1 = arith.constant 0 : index
    %c0_2 = arith.constant 0 : index
    %1 = vector.load %arg3[%c0_1, %c0_2] : memref<16x32xbf16, #tpu.memory_space<vmem>>, vector<16x32xbf16>
    %cst = arith.constant dense<0.000000e+00> : vector<16x32xf32>
    %2 = tpu.matmul %0, %1, %cst {dimension_numbers = #tpu.dot_dimension_numbers<[1], [0], [0], [1], [0, 0, 1, 1], [], []>} : vector<16x16xbf16>, vector<16x32xbf16>, vector<16x32xf32> -> vector<16x32xf32>
    %c0_3 = arith.constant 0 : index
    %c0_4 = arith.constant 0 : index
    %3 = vector.load %arg4[%c0_3, %c0_4] : memref<1x32xf32, #tpu.memory_space<vmem>>, vector<1x32xf32>
    %4 = vector.broadcast %3 : vector<1x32xf32> to vector<16x32xf32>
    %5 = arith.addf %2, %4 : vector<16x32xf32>
    %c0_5 = arith.constant 0 : index
    %c0_6 = arith.constant 0 : index
    %6 = vector.load %arg5[%c0_5, %c0_6] : memref<16x32xf32, #tpu.memory_space<vmem>>, vector<16x32xf32>
    tpu.vector_store %arg5[%c0_5, %c0_6], %5 {strides = array<i32>} : memref<16x32xf32, #tpu.memory_space<vmem>>, vector<16x32xf32>,
    return
  }
  func.func @transform_0(%arg0: i32, %arg1: i32) -> (i32, i32) {
    %c0_i32 = arith.constant 0 : i32
    %c0_i32_0 = arith.constant 0 : i32
    return %arg0, %c0_i32 : i32, i32
  }
  func.func @transform_1(%arg0: i32, %arg1: i32) -> (i32, i32) {
    %c0_i32 = arith.constant 0 : i32
    %c0_i32_0 = arith.constant 0 : i32
    return %c0_i32, %arg1 : i32, i32
  }
  func.func @transform_2(%arg0: i32, %arg1: i32) -> (i32, i32) {
    %c0_i32 = arith.constant 0 : i32
    %c0_i32_0 = arith.constant 0 : i32
    return %c0_i32, %arg1 : i32, i32
  }
  func.func @transform_3(%arg0: i32, %arg1: i32) -> (i32, i32) {
    %c0_i32 = arith.constant 0 : i32
    return %arg0, %arg1 : i32, i32
  }
}

</mosaic_0001>

<llo_original>
// kernel: tpu_custom_call.1
$region0: #{tpu_custom_call.1}
  #allocation0 [shape = 'u32[]', space=smem, size = 0x4, offset = 0x4, fixed_abs, tag = 'smem constant byte address 0x4 - core index']
  #allocation1 [shape = 'u32[72,128]{1,0:T(1,128)}', space=vmem, size = 0x9000, scoped, tag = 'internal scratch']
  %s0 = inlined_call_operand.vmem [shape: bf16[32,16], index: 0, kind: input, shape index: {}]
  %s1 = inlined_call_operand.vmem [shape: bf16[16,32], index: 1, kind: input, shape index: {}]
  %s2 = inlined_call_operand.vmem [shape: f32[1,32], index: 2, kind: input, shape index: {}]
  %s3 = inlined_call_operand.hbm [shape: f32[32,32], index: 3, kind: output, shape index: {}]
  %s4 = sld [smem:[#allocation0]]
  $region45: #{tpu_custom_call.1} parent=0
    _
  %s6 = ssub.s32 1, %s4
  %s7 = scalar_select 0, %s6, %s4
  $region1: #{tpu_custom_call.1} parent=0
    #allocation2 [shape = 'u8[16384]{0}', space=vmem, size = 0x4000, scoped, tag = 'output window, operand 0']
    #allocation3 [shape = 's32[2]{0}', space=sflag, size = 0x8, scoped, tag = 'scoped memory for tpu_custom_call.1']
    %8 = vsyncpa [#allocation3], 0
    %s9 = scalar_lea.sflag [#allocation3], 1
    %10 = vsyncpa %s9, 0
    loop: start=0, step=1, limit=4
    $region2: #{tpu_custom_call.1} parent=1 // loop_pre_header
      _
    $region3: #{tpu_custom_call.1} parent=1 // loop_header
      %s12 = sphi 0, %s16
      %p13 = scmp.ge.s32.totalorder %s12, 4
      %s19 = sphi 0, %s31
      %s20 = sphi 0, %s27
      %s21 = sphi 0, %s19
      %s22 = sphi 0, %s20
      %s23 = sphi 0, %s21
      %s24 = sphi 0, %s22
      %s34 = sphi 0, %s36
      %s37 = sphi 0, %s34
      %s38 = sphi 0, %s37
      %s54 = sphi 0, %s38
      %s60 = sphi 0, %s62
      %s63 = sphi 0, %s60
      %s64 = sphi 0, %s63
      %s80 = sphi 0, %s64
      %s86 = sphi 0, %s88
      %s89 = sphi 0, %s86
      %s90 = sphi 0, %s89
      %s106 = sphi 0, %s90
      %s114 = sphi 0, %s116
      %s117 = sphi 0, %s114
      %s118 = sphi 0, %s117
      %s134 = sphi 0, %s118
    $region4: #{tpu_custom_call.1} parent=1 // loop_header_branch
      %15 = sbr.rel (%p13) target = $region8
    $region5: #{tpu_custom_call.1} parent=1 // loop_body
      %s17 = ssub.s32 %s12, 1
      %s18 = ssub.s32 %s12, 2
      %s25 = sadd.s32 1, %s20
      %p26 = scmp.ge.s32.totalorder %s25, 1
      %s27 = scalar_select %p26, 0, %s25
      %s28 = sadd.s32 1, %s19
      %s29 = scalar_select %p26, %s28, %s19
      %p30 = scmp.ge.s32.totalorder %s29, 2
      %s31 = scalar_select %p30, 0, %s29
      %s32 = ssub.s32 %s19, %s31
      %p33 = scmp.eq.s32.totalorder %s32, 0
      %s35 = sadd.s32 %s34, 1
      %s36 = scalar_select %p33, %s34, %s35
      %p39 = pneg %p33
      %p40 = scmp.eq.s32.totalorder %s12, 1
      %p41 = por %p39, %p40
      %p42 = scmp.ne.s32.totalorder %s34, %s37
      %p43 = scmp.eq.s32.totalorder %s12, 0
      %p44 = por %p42, %p43
      %p45 = scmp.ne.s32.totalorder %s34, %s37
      %p46 = scmp.eq.s32.totalorder %s17, 1
      %p47 = por %p45, %p46
      %p48 = scmp.ne.s32.totalorder %s37, %s38
      %p49 = scmp.eq.s32.totalorder %s17, 0
      %p50 = por %p48, %p49
      %p51 = scmp.ne.s32.totalorder %s37, %s38
      %p52 = scmp.eq.s32.totalorder %s18, 1
      %p53 = por %p51, %p52
      %p55 = scmp.ne.s32.totalorder %s38, %s54
      %p56 = scmp.eq.s32.totalorder %s18, 0
      %p57 = por %p55, %p56
      %s58 = ssub.s32 %s20, %s27
      %p59 = scmp.eq.s32.totalorder %s58, 0
      %s61 = sadd.s32 %s60, 1
      %s62 = scalar_select %p59, %s60, %s61
      %p65 = pneg %p59
      %p66 = scmp.eq.s32.totalorder %s12, 1
      %p67 = por %p65, %p66
      %p68 = scmp.ne.s32.totalorder %s60, %s63
      %p69 = scmp.eq.s32.totalorder %s12, 0
      %p70 = por %p68, %p69
      %p71 = scmp.ne.s32.totalorder %s60, %s63
      %p72 = scmp.eq.s32.totalorder %s17, 1
      %p73 = por %p71, %p72
      %p74 = scmp.ne.s32.totalorder %s63, %s64
      %p75 = scmp.eq.s32.totalorder %s17, 0
      %p76 = por %p74, %p75
      %p77 = scmp.ne.s32.totalorder %s63, %s64
      %p78 = scmp.eq.s32.totalorder %s18, 1
      %p79 = por %p77, %p78
      %p81 = scmp.ne.s32.totalorder %s64, %s80
      %p82 = scmp.eq.s32.totalorder %s18, 0
      %p83 = por %p81, %p82
      %s84 = ssub.s32 %s20, %s27
      %p85 = scmp.eq.s32.totalorder %s84, 0
      %s87 = sadd.s32 %s86, 1
      %s88 = scalar_select %p85, %s86, %s87
      %p91 = pneg %p85
      %p92 = scmp.eq.s32.totalorder %s12, 1
      %p93 = por %p91, %p92
      %p94 = scmp.ne.s32.totalorder %s86, %s89
      %p95 = scmp.eq.s32.totalorder %s12, 0
      %p96 = por %p94, %p95
      %p97 = scmp.ne.s32.totalorder %s86, %s89
      %p98 = scmp.eq.s32.totalorder %s17, 1
      %p99 = por %p97, %p98
      %p100 = scmp.ne.s32.totalorder %s89, %s90
      %p101 = scmp.eq.s32.totalorder %s17, 0
      %p102 = por %p100, %p101
      %p103 = scmp.ne.s32.totalorder %s89, %s90
      %p104 = scmp.eq.s32.totalorder %s18, 1
      %p105 = por %p103, %p104
      %p107 = scmp.ne.s32.totalorder %s90, %s106
      %p108 = scmp.eq.s32.totalorder %s18, 0
      %p109 = por %p107, %p108
      %s110 = ssub.s32 %s19, %s31
      %s111 = ssub.s32 %s20, %s27
      %s112 = sor.u32 %s110, %s111
      %p113 = scmp.eq.s32.totalorder %s112, 0
      %s115 = sadd.s32 %s114, 1
      %s116 = scalar_select %p113, %s114, %s115
      %p119 = pneg %p113
      %p120 = scmp.eq.s32.totalorder %s12, 1
      %p121 = por %p119, %p120
      %p122 = scmp.ne.s32.totalorder %s114, %s117
      %p123 = scmp.eq.s32.totalorder %s12, 0
      %p124 = por %p122, %p123
      %p125 = scmp.ne.s32.totalorder %s114, %s117
      %p126 = scmp.eq.s32.totalorder %s17, 1
      %p127 = por %p125, %p126
      %p128 = scmp.ne.s32.totalorder %s117, %s118
      %p129 = scmp.eq.s32.totalorder %s17, 0
      %p130 = por %p128, %p129
      %p131 = scmp.ne.s32.totalorder %s117, %s118
      %p132 = scmp.eq.s32.totalorder %s18, 1
      %p133 = por %p131, %p132
      %p135 = scmp.ne.s32.totalorder %s118, %s134
      %p136 = scmp.eq.s32.totalorder %s18, 0
      %p137 = por %p135, %p136
      %p138 = scmp.le.s32.totalorder 1, %s12
      %p139 = scmp.lt.s32.totalorder %s12, 3
      %p140 = pnand %p138, %p139
      %p141 = pneg %p140
      // Predicated region
      $region9: #{tpu_custom_call.1} parent=5 // pred_check
        _
      $region10: #{tpu_custom_call.1} parent=5 // pred_check_branch
        %143 = sbr.rel (%p140) target = $region12
      $region11: #{tpu_custom_call.1} parent=5 // pred_region
        %s144 = ssub.s32 %s12, 1
        // Predicated region
        $region13: #{tpu_custom_call.1} parent=11 // pred_check
          %p145 = pneg %p76
        $region14: #{tpu_custom_call.1} parent=11 // pred_check_branch
          %147 = sbr.rel (%p145) target = $region16
        $region15: #{tpu_custom_call.1} parent=11 // pred_region
          %p148 = scmp.lt.s32.totalorder %s22, 0
          %s149 = scalar_select %p148, %s22, 0
          %s150 = smul.addr %s149, 4
          %s151 = scalar_lea.vmem %s1, %s150
        $region16: #{tpu_custom_call.1} parent=11 // pred_fallthru
          _
        // Predicated region
        $region17: #{tpu_custom_call.1} parent=11 // pred_check
          %p152 = pneg %p102
        $region18: #{tpu_custom_call.1} parent=11 // pred_check_branch
          %154 = sbr.rel (%p152) target = $region20
        $region19: #{tpu_custom_call.1} parent=11 // pred_region
          %p155 = scmp.lt.s32.totalorder %s22, 0
          %s156 = scalar_select %p155, %s22, 0
          %s157 = scalar_lea.vmem %s2, %s156
        $region20: #{tpu_custom_call.1} parent=11 // pred_fallthru
          _
      $region12: #{tpu_custom_call.1} parent=5 // pred_fallthru
        _
      %p158 = scmp.lt.s32.totalorder %s12, 2
      // Predicated region
      $region21: #{tpu_custom_call.1} parent=5 // pred_check
        %p159 = pneg %p158
      $region22: #{tpu_custom_call.1} parent=5 // pred_check_branch
        %161 = sbr.rel (%p159) target = $region24
      $region23: #{tpu_custom_call.1} parent=5 // pred_region
        // Predicated region
        $region25: #{tpu_custom_call.1} parent=23 // pred_check
          %p162 = pneg %p44
        $region26: #{tpu_custom_call.1} parent=23 // pred_check_branch
          %164 = sbr.rel (%p162) target = $region28
        $region27: #{tpu_custom_call.1} parent=23 // pred_region
          %s165 = smul.u32 2, %s19
          %p166 = scmp.lt.s32.totalorder %s165, 3
          %s167 = scalar_select %p166, %s165, 3
          %s168 = smul.addr %s167, 4
          %s169 = scalar_lea.vmem %s0, %s168
          %s170 = smul.u32 2, %s19
        $region28: #{tpu_custom_call.1} parent=23 // pred_fallthru
          _
      $region24: #{tpu_custom_call.1} parent=5 // pred_fallthru
        _
      %p171 = scmp.le.s32.totalorder 1, %s12
      %p172 = scmp.lt.s32.totalorder %s12, 3
      %p173 = pnand %p171, %p172
      %p174 = pneg %p173
      // Predicated region
      $region29: #{tpu_custom_call.1} parent=5 // pred_check
        _
      $region30: #{tpu_custom_call.1} parent=5 // pred_check_branch
        %176 = sbr.rel (%p173) target = $region32
      $region31: #{tpu_custom_call.1} parent=5 // pred_region
        %s177 = ssub.s32 %s12, 1
        %s178 = smul.u32 2, %s21
        %p179 = scmp.lt.s32.totalorder %s178, 3
        %s180 = scalar_select %p179, %s178, 3
        %s181 = smul.addr %s180, 4
        %s182 = scalar_lea.vmem %s0, %s181
        %p183 = pneg %p50
        %p184 = pneg %p47
        %p185 = scmp.lt.s32.totalorder %s22, 0
        %s186 = scalar_select %p185, %s22, 0
        %s187 = smul.addr %s186, 4
        %s188 = scalar_lea.vmem %s1, %s187
        %p189 = pneg %p76
        %p190 = pneg %p73
        %p191 = scmp.lt.s32.totalorder %s22, 0
        %s192 = scalar_select %p191, %s22, 0
        %s193 = scalar_lea.vmem %s2, %s192
        %p194 = pneg %p102
        %p195 = pneg %p99
        %p196 = pneg %p130
        %p197 = pneg %p127
        %s198 = sand.u32 %s117, 1
        %s199 = scalar_lea.sflag [#allocation3], %s198
        %s200 = sand.u32 %s117, 1
        %s201 = smul.addr %s200, 16
        %s202 = scalar_lea.vmem [#allocation2], %s201
        %s203 = smul.u32 2, %s21
        %p204 = scmp.lt.s32.totalorder %s203, 3
        %s205 = scalar_select %p204, %s203, 3
        %s206 = smul.addr %s205, 4
        %s207 = scalar_lea.vmem %s0, %s206
        %s208 = smul.u32 2, %s21
        %p209 = scmp.lt.s32.totalorder %s22, 0
        %s210 = scalar_select %p209, %s22, 0
        %s211 = smul.addr %s210, 4
        %s212 = scalar_lea.vmem %s1, %s211
        %p213 = scmp.lt.s32.totalorder %s22, 0
        %s214 = scalar_select %p213, %s22, 0
        %s215 = scalar_lea.vmem %s2, %s214
        %s216 = smul.u32 2, %s21
        %v218 = vld [vmem:[%s207] sm:$0xf]
        %v219 = vld [vmem:[%s207 + $0x4] sm:$0xf]
        %v220 = vld [vmem:[%s212] sm:$0xf]
        %v221 = vld [vmem:[%s212 + $0x4] sm:$0xf]
        %v222 = vld [vmem:[%s215] sm:$0x1]
        %v224 = vperm.slane %v222, 0
        %v228 = vunpack.c.l.b16 %v218
        %v229 = vunpack.c.l.b16 %v219
        %v230 = vpack.c.b16 %v229, %v228
        %v233 = vunpack.c.l.b16 %v220
        %v234 = vunpack.c.l.b16 %v221
        %v235 = vpack.c.b16 %v234, %v233
        %vm237 = vcmask 130048
        %v239 = vsel %vm237, %v230, 0
        %241 = vmatpush.bf16.msra.mxu0 0
        %242 = vmatpush.bf16.msra.mxu0 0
        %243 = vmatpush.bf16.msra.mxu0 0
        %244 = vmatpush.bf16.msra.mxu0 0
        %245 = vmatpush.bf16.msra.mxu0 0
        %246 = vmatpush.bf16.msra.mxu0 0
        %247 = vmatpush.bf16.msra.mxu0 0
        %248 = vmatpush.bf16.msra.mxu0 %v235
        %249 = vmatmul.bf16.gmra.mxu0 %v239
        %v250 = vpop.f32.mrf.mxu0
        %v251 = vadd.f32 %v224, %v250
        %v252 = vpop.f32.mrf.mxu0
        %v253 = vadd.f32 %v224, %v252
        %254 = vdwg.mxu0
        %vm255 = vcmask 261120
        %256 = vst.msk [vmem:[%s202] sm:$0xff] %vm255, %v251
        %257 = vst.msk [vmem:[%s202 + $0x8] sm:$0xff] %vm255, %v253
        %s258 = sand.u32 %s117, 1
        %s259 = scalar_lea.sflag [#allocation3], %s258
        %s260 = sand.u32 %s117, 1
        %s261 = smul.addr %s260, 16
        %s262 = scalar_lea.vmem [#allocation2], %s261
        // Predicated region
        $region33: #{tpu_custom_call.1} parent=31 // pred_check
          %p263 = pneg %p127
        $region34: #{tpu_custom_call.1} parent=31 // pred_check_branch
          %265 = sbr.rel (%p263) target = $region36
        $region35: #{tpu_custom_call.1} parent=31 // pred_region
          %s266 = smul.u32 2, %s21
          %268 = vsyncadd %s259, 0
          %s269 = sadd.s32 %s22, %s266
          %s270 = smul.addr %s269, 8
          %s271 = scalar_lea.hbm %s3, %s270
          %s272 = sshll.u32 %s262, 4
          %s273 = int_to_ptr.vmem [resolvable:$true] %s272
          %s274 = sshll.u32 %s271, 4
          %s275 = int_to_ptr.hbm [resolvable:$true] %s274
          %280 = dma.vmem_to_hbm [thread:$0]  %s273, 256, %s275, %s259, 128, 128, 8
        $region36: #{tpu_custom_call.1} parent=31 // pred_fallthru
          _
      $region32: #{tpu_custom_call.1} parent=5 // pred_fallthru
        _
      %p281 = scmp.le.s32.totalorder 2, %s12
      // Predicated region
      $region37: #{tpu_custom_call.1} parent=5 // pred_check
        %p282 = pneg %p281
      $region38: #{tpu_custom_call.1} parent=5 // pred_check_branch
        %284 = sbr.rel (%p282) target = $region40
      $region39: #{tpu_custom_call.1} parent=5 // pred_region
        %s285 = ssub.s32 %s12, 2
        // Predicated region
        $region41: #{tpu_custom_call.1} parent=39 // pred_check
          %p286 = pneg %p133
        $region42: #{tpu_custom_call.1} parent=39 // pred_check_branch
          %288 = sbr.rel (%p286) target = $region44
        $region43: #{tpu_custom_call.1} parent=39 // pred_region
          %s289 = sand.u32 %s118, 1
          %s290 = scalar_lea.sflag [#allocation3], %s289
          %s291 = sand.u32 %s118, 1
          %s292 = smul.addr %s291, 16
          %s293 = scalar_lea.vmem [#allocation2], %s292
          %295 = dma.done %s290, 256
        $region44: #{tpu_custom_call.1} parent=39 // pred_fallthru
          _
      $region40: #{tpu_custom_call.1} parent=5 // pred_fallthru
        _
    $region6: #{tpu_custom_call.1} parent=1 // loop_footer
      %s16 = sadd.s32 1, %s12
    $region7: #{tpu_custom_call.1} parent=1 // loop_footer_branch
      %11 = sbr.rel target = $region3
    $region8: #{tpu_custom_call.1} parent=1 // loop_exit
      _
    %296 = vsyncpa [#allocation3], 1
    %s297 = scalar_lea.sflag [#allocation3], 1
    %298 = vsyncpa %s297, 1

</llo_original>
